<compile_context>
chip_gen: v6e
topology: v6e:2x2x1
jax: 0.10.0
libtpu: 0.0.40
codegen_flags: <defaults>
</compile_context>

<pallas_src>
import functools

import jax
import jax.numpy as jnp
from jax.experimental import pallas as pl
from jax.experimental.pallas import tpu as pltpu


# ---------------------------------------------------------------------------
# Kernels
# ---------------------------------------------------------------------------

def _conv_kernel_proj(x_ref, w_ref, b_ref, fcw_ref, fcb_ref, o_ref, xp_ref):
    # x_ref:  (BB, T, C) batch tile of x.
    # w_ref:  (W, T, C)  shift-ordered, t%3-selected, causally-masked weights.
    # b_ref:  (T, C)     t%3-selected bias.
    # fcw_ref:(C, C)     pre-transposed Linear weight (bf16 or f32).
    # fcb_ref:(1, C)     Linear bias (f32).
    # o_ref:  (BB, T, C) output tile.
    # xp_ref: (BB, T+W-1, C) causal-pad staging scratch.
    BB, T, C = o_ref.shape
    W = w_ref.shape[0]

    # In-kernel causal left-pad.  Pad rows are re-zeroed on EVERY grid step so
    # the kernel is correct when the "parallel" grid axis is sharded across
    # TensorCores (v7x).  (A pltpu.roll tap path would avoid this staging
    # store; kept for lowering robustness -- cost: one extra VMEM store pass.)
    if W > 1:
        xp_ref[:, : W - 1, :] = jnp.zeros((BB, W - 1, C), xp_ref.dtype)
    xp_ref[:, W - 1:, :] = x_ref[...]

    # Depthwise taps: the (T, C) weight slice broadcasts over the leading
    # batch axis (no batch-tiled weight table).  Bias folded into acc init.
    acc = jnp.broadcast_to(b_ref[...], (BB, T, C)).astype(jnp.float32)
    for s in range(W):                       # static unroll over small window
        k = W - 1 - s                        # tap offset in the padded buffer
        acc = acc + xp_ref[:, k:k + T, :] * w_ref[s]

    # fc projection (dropout = identity in eval).  fcw is pre-transposed in
    # the wrapper; its dtype (bf16 for MXU throughput, or f32) sets the matmul
    # operand dtype while accumulation stays f32.  The reshape keeps the MXU
    # M-dim = BB*T and is layout-trivial when T % 8 == 0.
    acc2 = acc.reshape(BB * T, C).astype(fcw_ref.dtype)
    out = jnp.dot(acc2, fcw_ref[...], preferred_element_type=jnp.float32)
    out = out + fcb_ref[...]
    o_ref[...] = out.reshape(BB, T, C).astype(o_ref.dtype)


def _conv_kernel_noproj(x_ref, w_ref, b_ref, o_ref, xp_ref):
    BB, T, C = o_ref.shape
    W = w_ref.shape[0]
    if W > 1:
        xp_ref[:, : W - 1, :] = jnp.zeros((BB, W - 1, C), xp_ref.dtype)
    xp_ref[:, W - 1:, :] = x_ref[...]
    acc = jnp.broadcast_to(b_ref[...], (BB, T, C)).astype(jnp.float32)
    for s in range(W):
        k = W - 1 - s
        acc = acc + xp_ref[:, k:k + T, :] * w_ref[s]
    o_ref[...] = acc.astype(o_ref.dtype)


# ---------------------------------------------------------------------------
# One-time table building (hoisted out of the per-call path)
# ---------------------------------------------------------------------------

def build_conv_tables(params, T, W, *, conv_proj=True, matmul_bf16=True):
    """Precompute ONCE: t%3-preselected, shift-ordered, causally-masked conv
    weight/bias tables and the pre-transposed fc weight.

    Returns {"w": (W,T,C) f32, "b": (T,C) f32[, "fcw": (C,C), "fcb": (1,C)]}.
    """
    wr, wo, wa = params["w_rtg"], params["w_obs"], params["w_act"]   # (W, C)
    br, bo, ba = params["b_rtg"], params["b_obs"], params["b_act"]   # (1, C)
    t = jnp.arange(T)
    mod = t % 3
    w_stack = jnp.stack([wr, wo, wa], axis=0)             # (3, W, C)
    b_stack = jnp.stack([br[0], bo[0], ba[0]], axis=0)    # (3, C)
    w_t = w_stack[mod]                                    # (T, W, C)
    b_t = b_stack[mod]                                    # (T, C)
    # Tap k contributes w[k] * x[t - (W-1-k)]; index taps by shift s = W-1-k.
    w_shift = jnp.transpose(w_t[:, ::-1, :], (1, 0, 2))   # (W, T, C)
    causal = (t[None, :] >= jnp.arange(W)[:, None]).astype(w_shift.dtype)
    w_shift = w_shift * causal[:, :, None]                # taps reading pad -> 0
    tables = {"w": w_shift.astype(jnp.float32), "b": b_t.astype(jnp.float32)}
    if conv_proj:
        fcw_dtype = jnp.bfloat16 if matmul_bf16 else jnp.float32
        tables["fcw"] = params["fc_w"].T.astype(fcw_dtype)   # pre-transposed
        tables["fcb"] = params["fc_b"].astype(jnp.float32)   # (1, C)
    return tables


# ---------------------------------------------------------------------------
# Tile sizing / VMEM budgeting
# ---------------------------------------------------------------------------

def _vmem_capacity_bytes():
    try:
        return int(pltpu.get_tpu_info().vmem_capacity_bytes)
    except Exception:
        return 64 * 1024 * 1024           # v7x per-TensorCore floor


def _vmem_need_bytes(block_b, T, C, W, conv_proj, fcw_itemsize):
    tile = block_b * T * C * 4            # x tile (f32); out tile is the same
    wtab = W * T * C * 4
    btab = T * C * 4
    fc = (C * C * fcw_itemsize + C * 4) if conv_proj else 0
    scratch = block_b * (T + W - 1) * C * 4
    # x/out double-buffered; grid-invariant tables also get 2 buffers under
    # the default pipeliner (small after de-tiling).
    return 2 * (tile + tile) + 2 * (wtab + btab + fc) + scratch


def _pick_block_b(B, T, C, W, conv_proj, fcw_itemsize, vmem_cap):
    budget = vmem_cap // 2                # leave headroom for compiler scratch
    best = 1
    for d in range(1, B + 1):
        if B % d:
            continue
        if B >= 2 and B // d < 2:         # keep >= 2 grid steps (v7x megacore)
            continue
        if _vmem_need_bytes(d, T, C, W, conv_proj, fcw_itemsize) <= budget:
            best = max(best, d)
    return best


# ---------------------------------------------------------------------------
# Forward
# ---------------------------------------------------------------------------

@functools.partial(jax.jit, static_argnames=("window_size", "conv_proj"))
def convolution_forward(x, tables, *, window_size, conv_proj=True):
    """Eval-mode forward of the mingpt Convolution block.

    x: (B, T, C) float32.  tables: output of build_conv_tables (reused across
    calls).  Returns (B, T, C) in x.dtype.
    """
    B, T, C = x.shape
    W = window_size

    fcw_itemsize = tables["fcw"].dtype.itemsize if conv_proj else 4
    vmem_cap = _vmem_capacity_bytes()
    block_b = _pick_block_b(B, T, C, W, conv_proj, fcw_itemsize, vmem_cap)
    need = _vmem_need_bytes(block_b, T, C, W, conv_proj, fcw_itemsize)
    vmem_limit = max(32 * 1024 * 1024,
                     min(int(need * 1.5) + (2 << 20), int(vmem_cap * 0.9)))

    in_specs = [
        pl.BlockSpec((block_b, T, C), lambda b: (b, 0, 0)),   # x batch tile
        pl.BlockSpec((W, T, C), lambda b: (0, 0, 0)),         # conv weights
        pl.BlockSpec((T, C), lambda b: (0, 0)),               # conv bias
    ]
    args = [x, tables["w"], tables["b"]]
    if conv_proj:
        in_specs += [pl.BlockSpec((C, C), lambda b: (0, 0)),  # fc weight^T
                     pl.BlockSpec((1, C), lambda b: (0, 0))]  # fc bias
        args += [tables["fcw"], tables["fcb"]]
        kernel = _conv_kernel_proj
    else:
        kernel = _conv_kernel_noproj

    out = pl.pallas_call(
        kernel,
        out_shape=jax.ShapeDtypeStruct((B, T, C), x.dtype),
        grid_spec=pltpu.PrefetchScalarGridSpec(
            num_scalar_prefetch=0,
            grid=(B // block_b,),
            in_specs=in_specs,
            out_specs=pl.BlockSpec((block_b, T, C), lambda b: (b, 0, 0)),
            scratch_shapes=[pltpu.VMEM((block_b, T + W - 1, C), x.dtype)],
        ),
        compiler_params=pltpu.CompilerParams(
            dimension_semantics=("parallel",),
            vmem_limit_bytes=vmem_limit,
        ),
    )(*args)
    return out


# ---------------------------------------------------------------------------
# Pure-JAX reference (mirrors the PyTorch module, eval mode)
# ---------------------------------------------------------------------------

def reference_forward(x, params, window_size, conv_proj=True):
    B, T, C = x.shape
    W = window_size
    xp = jnp.pad(x, ((0, 0), (W - 1, 0), (0, 0)))

    def dconv(w, b):
        out = jnp.zeros((B, T, C), jnp.float32)
        for k in range(W):
            out = out + xp[:, k:k + T, :] * w[k][None, None, :]
        return out + b[0][None, None, :]

    r = dconv(params["w_rtg"], params["b_rtg"])
    o = dconv(params["w_obs"], params["b_obs"])
    a = dconv(params["w_act"], params["b_act"])
    t_mod = (jnp.arange(T) % 3)[None, :, None]
    comb = jnp.where(t_mod == 0, r, jnp.where(t_mod == 1, o, a))
    if conv_proj:
        comb = jnp.dot(comb, params["fc_w"].T,
                       precision=jax.lax.Precision.HIGHEST) + params["fc_b"][0]
    return comb


if __name__ == "__main__":
    # Small config consistent with the module: n_embd = 128 (lane-dense,
    # multiple of 128 per perf feedback), window_size = 4, T = 24 (multiple of
    # 3 for rtg/obs/act triplets and of 8 for layout-trivial reshapes), B = 4.
    B, T, C, W = 4, 24, 128, 4

    key = jax.random.PRNGKey(0)
    ks = jax.random.split(key, 9)
    scale = 0.1
    params = {
        # Depthwise Conv1d weights: PyTorch (C, 1, W) -> stored as (W, C).
        "w_rtg": scale * jax.random.normal(ks[0], (W, C), jnp.float32),
        "w_obs": scale * jax.random.normal(ks[1], (W, C), jnp.float32),
        "w_act": scale * jax.random.normal(ks[2], (W, C), jnp.float32),
        "b_rtg": scale * jax.random.normal(ks[3], (1, C), jnp.float32),
        "b_obs": scale * jax.random.normal(ks[4], (1, C), jnp.float32),
        "b_act": scale * jax.random.normal(ks[5], (1, C), jnp.float32),
        # Linear: PyTorch weight (C_out, C_in) = (C, C), bias (C,) -> (1, C).
        "fc_w": scale * jax.random.normal(ks[6], (C, C), jnp.float32),
        "fc_b": scale * jax.random.normal(ks[7], (1, C), jnp.float32),
    }
    x = jax.random.normal(ks[8], (B, T, C), jnp.float32)

    # Tables built once (hoisted out of the per-call path) and reused.
    tables_bf16 = build_conv_tables(params, T, W, conv_proj=True, matmul_bf16=True)
    tables_f32 = build_conv_tables(params, T, W, conv_proj=True, matmul_bf16=False)
    tables_np = build_conv_tables(params, T, W, conv_proj=False)

    ref_p = reference_forward(x, params, W, conv_proj=True)
    ref_np = reference_forward(x, params, W, conv_proj=False)

    # 1) No-projection path: exact f32 elementwise math.
    out_np = jax.block_until_ready(
        convolution_forward(x, tables_np, window_size=W, conv_proj=False))
    assert out_np.shape == (B, T, C)
    assert jnp.allclose(out_np, ref_np, atol=1e-5, rtol=1e-5), "noproj mismatch"

    # 2) Projection path with f32 MXU operands (strict-numerics option).
    out_f32 = jax.block_until_ready(
        convolution_forward(x, tables_f32, window_size=W, conv_proj=True))
    assert out_f32.shape == (B, T, C)
    assert jnp.allclose(out_f32, ref_p, atol=5e-3, rtol=5e-3), "proj f32 mismatch"

    # 3) Projection path with bf16 MXU operands (recommended production path).
    out_bf16 = jax.block_until_ready(
        convolution_forward(x, tables_bf16, window_size=W, conv_proj=True))
    assert out_bf16.shape == (B, T, C)
    assert jnp.allclose(out_bf16, ref_p, atol=3e-2, rtol=3e-2), "proj bf16 mismatch"

    print("KERNEL_OK")
</pallas_src>

<mosaic_0001>
module attributes {stable_mosaic.version = 11 : i64} {
  func.func @_conv_kernel_noproj(%arg0: i32, %arg1: memref<2x24x128xf32, #tpu.memory_space<vmem>>, %arg2: memref<4x24x128xf32, #tpu.memory_space<vmem>>, %arg3: memref<24x128xf32, #tpu.memory_space<vmem>>, %arg4: memref<2x24x128xf32, #tpu.memory_space<vmem>>, %arg5: memref<2x27x128xf32, #tpu.memory_space<vmem>>) attributes {dimension_semantics = [#tpu.dimension_semantics<parallel>], iteration_bounds = array<i64: 2>, scalar_prefetch = 0 : i64, scratch_operands = 1 : i64, tpu.core_type = #tpu.core_type<tc>, window_params = [{transform_indices = @transform_0, window_bounds = array<i64: 2, 24, 128>}, {pipeline_mode = #tpu.pipeline_mode<synchronous>, transform_indices = @transform_1, window_bounds = array<i64: 4, 24, 128>}, {pipeline_mode = #tpu.pipeline_mode<synchronous>, transform_indices = @transform_2, window_bounds = array<i64: 24, 128>}, {transform_indices = @transform_3, window_bounds = array<i64: 2, 24, 128>}]} {
    %cst = arith.constant 0.000000e+00 : f32
    %0 = vector.broadcast %cst : f32 to vector<2x3x128xf32>
    %c0 = arith.constant 0 : index
    %c0_0 = arith.constant 0 : index
    %c0_1 = arith.constant 0 : index
    %1 = vector.load %arg5[%c0, %c0_0, %c0_1] : memref<2x27x128xf32, #tpu.memory_space<vmem>>, vector<2x3x128xf32>
    tpu.vector_store %arg5[%c0, %c0_0, %c0_1], %0 {strides = array<i32>} : memref<2x27x128xf32, #tpu.memory_space<vmem>>, vector<2x3x128xf32>,
    %c0_2 = arith.constant 0 : index
    %c0_3 = arith.constant 0 : index
    %c0_4 = arith.constant 0 : index
    %2 = vector.load %arg1[%c0_2, %c0_3, %c0_4] : memref<2x24x128xf32, #tpu.memory_space<vmem>>, vector<2x24x128xf32>
    %c0_5 = arith.constant 0 : index
    %c3 = arith.constant 3 : index
    %c0_6 = arith.constant 0 : index
    %3 = vector.load %arg5[%c0_5, %c3, %c0_6] : memref<2x27x128xf32, #tpu.memory_space<vmem>>, vector<2x24x128xf32>
    tpu.vector_store %arg5[%c0_5, %c3, %c0_6], %2 {strides = array<i32>} : memref<2x27x128xf32, #tpu.memory_space<vmem>>, vector<2x24x128xf32>,
    %c0_7 = arith.constant 0 : index
    %c0_8 = arith.constant 0 : index
    %4 = vector.load %arg3[%c0_7, %c0_8] : memref<24x128xf32, #tpu.memory_space<vmem>>, vector<24x128xf32>
    %5 = vector.shape_cast %4 : vector<24x128xf32> to vector<1x24x128xf32>
    %6 = vector.broadcast %5 : vector<1x24x128xf32> to vector<2x24x128xf32>
    %c0_9 = arith.constant 0 : index
    %c3_10 = arith.constant 3 : index
    %c0_11 = arith.constant 0 : index
    %7 = vector.load %arg5[%c0_9, %c3_10, %c0_11] : memref<2x27x128xf32, #tpu.memory_space<vmem>>, vector<2x24x128xf32>
    %c0_12 = arith.constant 0 : index
    %c0_13 = arith.constant 0 : index
    %c0_14 = arith.constant 0 : index
    %8 = vector.load %arg2[%c0_12, %c0_13, %c0_14] : memref<4x24x128xf32, #tpu.memory_space<vmem>>, vector<1x24x128xf32>
    %9 = vector.shape_cast %8 : vector<1x24x128xf32> to vector<24x128xf32>
    %10 = vector.shape_cast %9 : vector<24x128xf32> to vector<1x24x128xf32>
    %11 = vector.broadcast %10 : vector<1x24x128xf32> to vector<2x24x128xf32>
    %12 = arith.mulf %7, %11 : vector<2x24x128xf32>
    %13 = arith.addf %6, %12 : vector<2x24x128xf32>
    %c0_15 = arith.constant 0 : index
    %c2 = arith.constant 2 : index
    %c0_16 = arith.constant 0 : index
    %14 = vector.load %arg5[%c0_15, %c2, %c0_16] : memref<2x27x128xf32, #tpu.memory_space<vmem>>, vector<2x24x128xf32>
    %c1 = arith.constant 1 : index
    %c0_17 = arith.constant 0 : index
    %c0_18 = arith.constant 0 : index
    %15 = vector.load %arg2[%c1, %c0_17, %c0_18] : memref<4x24x128xf32, #tpu.memory_space<vmem>>, vector<1x24x128xf32>
    %16 = vector.shape_cast %15 : vector<1x24x128xf32> to vector<24x128xf32>
    %17 = vector.shape_cast %16 : vector<24x128xf32> to vector<1x24x128xf32>
    %18 = vector.broadcast %17 : vector<1x24x128xf32> to vector<2x24x128xf32>
    %19 = arith.mulf %14, %18 : vector<2x24x128xf32>
    %20 = arith.addf %13, %19 : vector<2x24x128xf32>
    %c0_19 = arith.constant 0 : index
    %c1_20 = arith.constant 1 : index
    %c0_21 = arith.constant 0 : index
    %21 = vector.load %arg5[%c0_19, %c1_20, %c0_21] : memref<2x27x128xf32, #tpu.memory_space<vmem>>, vector<2x24x128xf32>
    %c2_22 = arith.constant 2 : index
    %c0_23 = arith.constant 0 : index
    %c0_24 = arith.constant 0 : index
    %22 = vector.load %arg2[%c2_22, %c0_23, %c0_24] : memref<4x24x128xf32, #tpu.memory_space<vmem>>, vector<1x24x128xf32>
    %23 = vector.shape_cast %22 : vector<1x24x128xf32> to vector<24x128xf32>
    %24 = vector.shape_cast %23 : vector<24x128xf32> to vector<1x24x128xf32>
    %25 = vector.broadcast %24 : vector<1x24x128xf32> to vector<2x24x128xf32>
    %26 = arith.mulf %21, %25 : vector<2x24x128xf32>
    %27 = arith.addf %20, %26 : vector<2x24x128xf32>
    %c0_25 = arith.constant 0 : index
    %c0_26 = arith.constant 0 : index
    %c0_27 = arith.constant 0 : index
    %28 = vector.load %arg5[%c0_25, %c0_26, %c0_27] : memref<2x27x128xf32, #tpu.memory_space<vmem>>, vector<2x24x128xf32>
    %c3_28 = arith.constant 3 : index
    %c0_29 = arith.constant 0 : index
    %c0_30 = arith.constant 0 : index
    %29 = vector.load %arg2[%c3_28, %c0_29, %c0_30] : memref<4x24x128xf32, #tpu.memory_space<vmem>>, vector<1x24x128xf32>
    %30 = vector.shape_cast %29 : vector<1x24x128xf32> to vector<24x128xf32>
    %31 = vector.shape_cast %30 : vector<24x128xf32> to vector<1x24x128xf32>
    %32 = vector.broadcast %31 : vector<1x24x128xf32> to vector<2x24x128xf32>
    %33 = arith.mulf %28, %32 : vector<2x24x128xf32>
    %34 = arith.addf %27, %33 : vector<2x24x128xf32>
    %c0_31 = arith.constant 0 : index
    %c0_32 = arith.constant 0 : index
    %c0_33 = arith.constant 0 : index
    %35 = vector.load %arg4[%c0_31, %c0_32, %c0_33] : memref<2x24x128xf32, #tpu.memory_space<vmem>>, vector<2x24x128xf32>
    tpu.vector_store %arg4[%c0_31, %c0_32, %c0_33], %34 {strides = array<i32>} : memref<2x24x128xf32, #tpu.memory_space<vmem>>, vector<2x24x128xf32>,
    return
  }
  func.func @transform_0(%arg0: i32) -> (i32, i32, i32) {
    %c0_i32 = arith.constant 0 : i32
    %c0_i32_0 = arith.constant 0 : i32
    %c0_i32_1 = arith.constant 0 : i32
    return %arg0, %c0_i32, %c0_i32_0 : i32, i32, i32
  }
  func.func @transform_1(%arg0: i32) -> (i32, i32, i32) {
    %c0_i32 = arith.constant 0 : i32
    %c0_i32_0 = arith.constant 0 : i32
    %c0_i32_1 = arith.constant 0 : i32
    %c0_i32_2 = arith.constant 0 : i32
    return %c0_i32, %c0_i32_0, %c0_i32_1 : i32, i32, i32
  }
  func.func @transform_2(%arg0: i32) -> (i32, i32) {
    %c0_i32 = arith.constant 0 : i32
    %c0_i32_0 = arith.constant 0 : i32
    %c0_i32_1 = arith.constant 0 : i32
    return %c0_i32, %c0_i32_0 : i32, i32
  }
  func.func @transform_3(%arg0: i32) -> (i32, i32, i32) {
    %c0_i32 = arith.constant 0 : i32
    %c0_i32_0 = arith.constant 0 : i32
    %c0_i32_1 = arith.constant 0 : i32
    return %arg0, %c0_i32, %c0_i32_0 : i32, i32, i32
  }
}

</mosaic_0001>

<llo_original>
// kernel: convolution_forward.1
$region0: #{convolution_forward.1}
  #allocation0 [shape = 'u32[]', space=smem, size = 0x4, offset = 0x4, fixed_abs, tag = 'smem constant byte address 0x4 - core index']
  #allocation1 [shape = 'u32[144,128]{1,0:T(1,128)}', space=vmem, size = 0x12000, scoped, tag = 'internal scratch']
  #allocation2 [shape = 'f32[2,27,128]{2,1,0:T(8,128)}', space=vmem, size = 0x8000, scoped, tag = 'scratch operand']
  %s0 = inlined_call_operand.hbm [shape: f32[4,24,128], index: 0, kind: input, shape index: {}]
  %s1 = inlined_call_operand.hbm [shape: f32[4,24,128], index: 1, kind: input, shape index: {}]
  %s2 = inlined_call_operand.hbm [shape: f32[24,128], index: 2, kind: input, shape index: {}]
  %s3 = inlined_call_operand.hbm [shape: f32[4,24,128], index: 3, kind: output, shape index: {}]
  %s4 = sld [smem:[#allocation0]]
  $region57: #{convolution_forward.1} parent=0
    _
  %s6 = ssub.s32 1, %s4
  %s7 = scalar_select 0, %s6, %s4
  $region1: #{convolution_forward.1} parent=0
    #allocation3 [shape = 'u8[49152]{0}', space=vmem, size = 0xc000, scoped, tag = 'input window, operand 0']
    #allocation4 [shape = 's32[2]{0}', space=sflag, size = 0x8, scoped, tag = 'scoped memory for convolution_forward.1']
    #allocation5 [shape = 's32[2]{0}', space=sflag, size = 0x8, scoped, tag = 'scoped memory for convolution_forward.1']
    #allocation6 [shape = 'u8[49152]{0}', space=vmem, size = 0xc000, scoped, tag = 'input window, operand 1, single buffered']
    #allocation7 [shape = 's32[1]{0}', space=sflag, size = 0x4, scoped, tag = 'scoped memory for convolution_forward.1']
    #allocation8 [shape = 'u8[12288]{0}', space=vmem, size = 0x3000, scoped, tag = 'input window, operand 2, single buffered']
    #allocation9 [shape = 'u8[49152]{0}', space=vmem, size = 0xc000, scoped, tag = 'output window, operand 0']
    %8 = vsyncpa [#allocation4], 0
    %s9 = scalar_lea.sflag [#allocation4], 1
    %10 = vsyncpa %s9, 0
    %11 = vsyncpa [#allocation7], 0
    %12 = vsyncpa [#allocation5], 0
    %s13 = scalar_lea.sflag [#allocation5], 1
    %14 = vsyncpa %s13, 0
    loop: start=0, step=1, limit=4
    $region2: #{convolution_forward.1} parent=1 // loop_pre_header
      _
    $region3: #{convolution_forward.1} parent=1 // loop_header
      %s16 = sphi 0, %s20
      %p17 = scmp.ge.s32.totalorder %s16, 4
      %s26 = sphi 0, %s28
      %s29 = sphi 0, %s26
      %s30 = sphi 0, %s29
      %s46 = sphi 0, %s30
      %s50 = sphi 0, %s50
      %s52 = sphi 0, %s50
      %s53 = sphi 0, %s52
      %s67 = sphi 0, %s53
      %s71 = sphi 0, %s71
      %s73 = sphi 0, %s71
      %s74 = sphi 0, %s73
      %s88 = sphi 0, %s74
      %s94 = sphi 0, %s96
      %s97 = sphi 0, %s94
      %s98 = sphi 0, %s97
      %s114 = sphi 0, %s98
    $region4: #{convolution_forward.1} parent=1 // loop_header_branch
      %19 = sbr.rel (%p17) target = $region8
    $region5: #{convolution_forward.1} parent=1 // loop_body
      %s21 = ssub.s32 %s16, 1
      %s22 = ssub.s32 %s16, 2
      %s23 = sadd.s32 %s16, 1
      %s24 = ssub.s32 %s16, %s23
      %p25 = scmp.eq.s32.totalorder %s24, 0
      %s27 = sadd.s32 %s26, 1
      %s28 = scalar_select %p25, %s26, %s27
      %p31 = pneg %p25
      %p32 = scmp.eq.s32.totalorder %s16, 1
      %p33 = por %p31, %p32
      %p34 = scmp.ne.s32.totalorder %s26, %s29
      %p35 = scmp.eq.s32.totalorder %s16, 0
      %p36 = por %p34, %p35
      %p37 = scmp.ne.s32.totalorder %s26, %s29
      %p38 = scmp.eq.s32.totalorder %s21, 1
      %p39 = por %p37, %p38
      %p40 = scmp.ne.s32.totalorder %s29, %s30
      %p41 = scmp.eq.s32.totalorder %s21, 0
      %p42 = por %p40, %p41
      %p43 = scmp.ne.s32.totalorder %s29, %s30
      %p44 = scmp.eq.s32.totalorder %s22, 1
      %p45 = por %p43, %p44
      %p47 = scmp.ne.s32.totalorder %s30, %s46
      %p48 = scmp.eq.s32.totalorder %s22, 0
      %p49 = por %p47, %p48
      %s51 = sadd.s32 %s50, 1
      %p54 = scmp.eq.s32.totalorder %s16, 1
      %p55 = scmp.ne.s32.totalorder %s50, %s52
      %p56 = scmp.eq.s32.totalorder %s16, 0
      %p57 = por %p55, %p56
      %p58 = scmp.ne.s32.totalorder %s50, %s52
      %p59 = scmp.eq.s32.totalorder %s21, 1
      %p60 = por %p58, %p59
      %p61 = scmp.ne.s32.totalorder %s52, %s53
      %p62 = scmp.eq.s32.totalorder %s21, 0
      %p63 = por %p61, %p62
      %p64 = scmp.ne.s32.totalorder %s52, %s53
      %p65 = scmp.eq.s32.totalorder %s22, 1
      %p66 = por %p64, %p65
      %p68 = scmp.ne.s32.totalorder %s53, %s67
      %p69 = scmp.eq.s32.totalorder %s22, 0
      %p70 = por %p68, %p69
      %s72 = sadd.s32 %s71, 1
      %p75 = scmp.eq.s32.totalorder %s16, 1
      %p76 = scmp.ne.s32.totalorder %s71, %s73
      %p77 = scmp.eq.s32.totalorder %s16, 0
      %p78 = por %p76, %p77
      %p79 = scmp.ne.s32.totalorder %s71, %s73
      %p80 = scmp.eq.s32.totalorder %s21, 1
      %p81 = por %p79, %p80
      %p82 = scmp.ne.s32.totalorder %s73, %s74
      %p83 = scmp.eq.s32.totalorder %s21, 0
      %p84 = por %p82, %p83
      %p85 = scmp.ne.s32.totalorder %s73, %s74
      %p86 = scmp.eq.s32.totalorder %s22, 1
      %p87 = por %p85, %p86
      %p89 = scmp.ne.s32.totalorder %s74, %s88
      %p90 = scmp.eq.s32.totalorder %s22, 0
      %p91 = por %p89, %p90
      %s92 = ssub.s32 %s16, %s23
      %p93 = scmp.eq.s32.totalorder %s92, 0
      %s95 = sadd.s32 %s94, 1
      %s96 = scalar_select %p93, %s94, %s95
      %p99 = pneg %p93
      %p100 = scmp.eq.s32.totalorder %s16, 1
      %p101 = por %p99, %p100
      %p102 = scmp.ne.s32.totalorder %s94, %s97
      %p103 = scmp.eq.s32.totalorder %s16, 0
      %p104 = por %p102, %p103
      %p105 = scmp.ne.s32.totalorder %s94, %s97
      %p106 = scmp.eq.s32.totalorder %s21, 1
      %p107 = por %p105, %p106
      %p108 = scmp.ne.s32.totalorder %s97, %s98
      %p109 = scmp.eq.s32.totalorder %s21, 0
      %p110 = por %p108, %p109
      %p111 = scmp.ne.s32.totalorder %s97, %s98
      %p112 = scmp.eq.s32.totalorder %s22, 1
      %p113 = por %p111, %p112
      %p115 = scmp.ne.s32.totalorder %s98, %s114
      %p116 = scmp.eq.s32.totalorder %s22, 0
      %p117 = por %p115, %p116
      %p118 = scmp.le.s32.totalorder 1, %s16
      %p119 = scmp.lt.s32.totalorder %s16, 3
      %p120 = pnand %p118, %p119
      %p121 = pneg %p120
      // Predicated region
      $region9: #{convolution_forward.1} parent=5 // pred_check
        _
      $region10: #{convolution_forward.1} parent=5 // pred_check_branch
        %123 = sbr.rel (%p120) target = $region12
      $region11: #{convolution_forward.1} parent=5 // pred_region
        %s124 = ssub.s32 %s16, 1
        // Predicated region
        $region13: #{convolution_forward.1} parent=11 // pred_check
          %p125 = pneg %p63
        $region14: #{convolution_forward.1} parent=11 // pred_check_branch
          %127 = sbr.rel (%p125) target = $region16
        $region15: #{convolution_forward.1} parent=11 // pred_region
          %s129 = ssub.s32 1536, 1536
          %130 = vsyncadd [#allocation7], %s129
          %s131 = sshll.u32 [#allocation6], 4
          %s132 = int_to_ptr.vmem [resolvable:$true] %s131
          %137 = dma.hbm_to_vmem [thread:$0]  %s1, 1536, %s132, [#allocation7], 128, 128, 8
        $region16: #{convolution_forward.1} parent=11 // pred_fallthru
          _
        // Predicated region
        $region17: #{convolution_forward.1} parent=11 // pred_check
          %p138 = pneg %p84
        $region18: #{convolution_forward.1} parent=11 // pred_check_branch
          %140 = sbr.rel (%p138) target = $region20
        $region19: #{convolution_forward.1} parent=11 // pred_region
          %s142 = ssub.s32 384, 384
          %143 = vsyncadd [#allocation7], %s142
          %s144 = sshll.u32 [#allocation8], 4
          %s145 = int_to_ptr.vmem [resolvable:$true] %s144
          %150 = dma.hbm_to_vmem [thread:$0]  %s2, 384, %s145, [#allocation7], 128, 128, 8
        $region20: #{convolution_forward.1} parent=11 // pred_fallthru
          _
      $region12: #{convolution_forward.1} parent=5 // pred_fallthru
        _
      %p151 = scmp.lt.s32.totalorder %s16, 2
      // Predicated region
      $region21: #{convolution_forward.1} parent=5 // pred_check
        %p152 = pneg %p151
      $region22: #{convolution_forward.1} parent=5 // pred_check_branch
        %154 = sbr.rel (%p152) target = $region24
      $region23: #{convolution_forward.1} parent=5 // pred_region
        // Predicated region
        $region25: #{convolution_forward.1} parent=23 // pred_check
          %p155 = pneg %p36
        $region26: #{convolution_forward.1} parent=23 // pred_check_branch
          %157 = sbr.rel (%p155) target = $region28
        $region27: #{convolution_forward.1} parent=23 // pred_region
          %s158 = sand.u32 %s26, 1
          %s159 = scalar_lea.sflag [#allocation4], %s158
          %s160 = sand.u32 %s26, 1
          %s161 = smul.addr %s160, 48
          %s162 = scalar_lea.vmem [#allocation3], %s161
          %s163 = smul.u32 2, %s16
          %s165 = ssub.s32 768, 768
          %166 = vsyncadd %s159, %s165
          %s167 = smul.addr %s163, 3
          %s168 = smul.addr %s167, 128
          %s169 = scalar_lea.hbm %s0, %s168
          %s170 = sshll.u32 %s162, 4
          %s171 = int_to_ptr.vmem [resolvable:$true] %s170
          %176 = dma.hbm_to_vmem [thread:$0]  %s169, 768, %s171, %s159, 128, 128, 8
        $region28: #{convolution_forward.1} parent=23 // pred_fallthru
          _
      $region24: #{convolution_forward.1} parent=5 // pred_fallthru
        _
      %p177 = scmp.le.s32.totalorder 1, %s16
      %p178 = scmp.lt.s32.totalorder %s16, 3
      %p179 = pnand %p177, %p178
      %p180 = pneg %p179
      // Predicated region
      $region29: #{convolution_forward.1} parent=5 // pred_check
        _
      $region30: #{convolution_forward.1} parent=5 // pred_check_branch
        %182 = sbr.rel (%p179) target = $region32
      $region31: #{convolution_forward.1} parent=5 // pred_region
        %s183 = ssub.s32 %s16, 1
        %s184 = sand.u32 %s29, 1
        %s185 = scalar_lea.sflag [#allocation4], %s184
        %s186 = sand.u32 %s29, 1
        %s187 = smul.addr %s186, 48
        %s188 = scalar_lea.vmem [#allocation3], %s187
        // Predicated region
        $region33: #{convolution_forward.1} parent=31 // pred_check
          %p189 = pneg %p42
        $region34: #{convolution_forward.1} parent=31 // pred_check_branch
          %191 = sbr.rel (%p189) target = $region36
        $region35: #{convolution_forward.1} parent=31 // pred_region
          %192 = dma.done %s185, 768
        $region36: #{convolution_forward.1} parent=31 // pred_fallthru
          _
        // Predicated region
        $region37: #{convolution_forward.1} parent=31 // pred_check
          %p193 = pneg %p63
        $region38: #{convolution_forward.1} parent=31 // pred_check_branch
          %195 = sbr.rel (%p193) target = $region40
        $region39: #{convolution_forward.1} parent=31 // pred_region
          %196 = dma.done [#allocation7], 1536
        $region40: #{convolution_forward.1} parent=31 // pred_fallthru
          _
        // Predicated region
        $region41: #{convolution_forward.1} parent=31 // pred_check
          %p197 = pneg %p84
        $region42: #{convolution_forward.1} parent=31 // pred_check_branch
          %199 = sbr.rel (%p197) target = $region44
        $region43: #{convolution_forward.1} parent=31 // pred_region
          %200 = dma.done [#allocation7], 384
        $region44: #{convolution_forward.1} parent=31 // pred_fallthru
          _
        %s201 = sand.u32 %s29, 1
        %s202 = scalar_lea.sflag [#allocation4], %s201
        %s203 = sand.u32 %s29, 1
        %s204 = smul.addr %s203, 48
        %s205 = scalar_lea.vmem [#allocation3], %s204
        %p206 = pneg %p42
        %p207 = pneg %p39
        %p208 = pneg %p63
        %p209 = pneg %p60
        %p210 = pneg %p84
        %p211 = pneg %p81
        %p212 = pneg %p110
        %p213 = pneg %p107
        %s214 = sand.u32 %s97, 1
        %s215 = scalar_lea.sflag [#allocation5], %s214
        %s216 = sand.u32 %s97, 1
        %s217 = smul.addr %s216, 48
        %s218 = scalar_lea.vmem [#allocation9], %s217
        %s219 = smul.u32 2, %s21
        %s220 = smul.u32 2, %s21
        %221 = vst [vmem:[#allocation2] sm:$0x7] 0.0
        %222 = vst [vmem:[#allocation2 + $0x20] sm:$0x7] 0.0
        %v223 = vld [vmem:[%s188] sm:$0xff]
        %v224 = vld [vmem:[%s188 + $0x8] sm:$0xff]
        %v225 = vld [vmem:[%s188 + $0x10] sm:$0xff]
        %v226 = vld [vmem:[%s188 + $0x18] sm:$0xff]
        %v227 = vld [vmem:[%s188 + $0x20] sm:$0xff]
        %v228 = vld [vmem:[%s188 + $0x28] sm:$0xff]
        %229 = vst [vmem:[#allocation2 + $0x3] sm:$0xff] %v223
        %230 = vst [vmem:[#allocation2 + $0xb] sm:$0xff] %v224
        %231 = vst [vmem:[#allocation2 + $0x13] sm:$0xff] %v225
        %232 = vst [vmem:[#allocation2 + $0x23] sm:$0xff] %v226
        %233 = vst [vmem:[#allocation2 + $0x2b] sm:$0xff] %v227
        %234 = vst [vmem:[#allocation2 + $0x33] sm:$0xff] %v228
        %v235 = vld [vmem:[#allocation8] sm:$0xff]
        %v236 = vld [vmem:[#allocation8 + $0x8] sm:$0xff]
        %v237 = vld [vmem:[#allocation8 + $0x10] sm:$0xff]
        %v238 = vld [vmem:[#allocation2 + $0x3] sm:$0xff]
        %v239 = vld [vmem:[#allocation2 + $0xb] sm:$0xff]
        %v240 = vld [vmem:[#allocation2 + $0x13] sm:$0xff]
        %v241 = vld [vmem:[#allocation2 + $0x23] sm:$0xff]
        %v242 = vld [vmem:[#allocation2 + $0x2b] sm:$0xff]
        %v243 = vld [vmem:[#allocation2 + $0x33] sm:$0xff]
        %v244 = vld [vmem:[#allocation6] sm:$0xff]
        %v245 = vld [vmem:[#allocation6 + $0x8] sm:$0xff]
        %v246 = vld [vmem:[#allocation6 + $0x10] sm:$0xff]
        %v247 = vmul.f32 %v238, %v244
        %v248 = vmul.f32 %v239, %v245
        %v249 = vmul.f32 %v240, %v246
        %v250 = vmul.f32 %v241, %v244
        %v251 = vmul.f32 %v242, %v245
        %v252 = vmul.f32 %v243, %v246
        %v253 = vadd.f32 %v235, %v247
        %v254 = vadd.f32 %v236, %v248
        %v255 = vadd.f32 %v237, %v249
        %v256 = vadd.f32 %v235, %v250
        %v257 = vadd.f32 %v236, %v251
        %v258 = vadd.f32 %v237, %v252
        %v259 = vld [vmem:[#allocation2 + $0x2] sm:$0xff]
        %v260 = vld [vmem:[#allocation2 + $0xa] sm:$0xff]
        %v261 = vld [vmem:[#allocation2 + $0x12] sm:$0xff]
        %v262 = vld [vmem:[#allocation2 + $0x22] sm:$0xff]
        %v263 = vld [vmem:[#allocation2 + $0x2a] sm:$0xff]
        %v264 = vld [vmem:[#allocation2 + $0x32] sm:$0xff]
        %s265 = scalar_lea.vmem [#allocation6], 24
        %v266 = vld [vmem:[%s265] sm:$0xff]
        %v267 = vld [vmem:[%s265 + $0x8] sm:$0xff]
        %v268 = vld [vmem:[%s265 + $0x10] sm:$0xff]
        %v269 = vmul.f32 %v259, %v266
        %v270 = vmul.f32 %v260, %v267
        %v271 = vmul.f32 %v261, %v268
        %v272 = vmul.f32 %v262, %v266
        %v273 = vmul.f32 %v263, %v267
        %v274 = vmul.f32 %v264, %v268
        %v275 = vadd.f32 %v253, %v269
        %v276 = vadd.f32 %v254, %v270
        %v277 = vadd.f32 %v255, %v271
        %v278 = vadd.f32 %v256, %v272
        %v279 = vadd.f32 %v257, %v273
        %v280 = vadd.f32 %v258, %v274
        %v281 = vld [vmem:[#allocation2 + $0x1] sm:$0xff]
        %v282 = vld [vmem:[#allocation2 + $0x9] sm:$0xff]
        %v283 = vld [vmem:[#allocation2 + $0x11] sm:$0xff]
        %v284 = vld [vmem:[#allocation2 + $0x21] sm:$0xff]
        %v285 = vld [vmem:[#allocation2 + $0x29] sm:$0xff]
        %v286 = vld [vmem:[#allocation2 + $0x31] sm:$0xff]
        %s287 = scalar_lea.vmem [#allocation6], 48
        %v288 = vld [vmem:[%s287] sm:$0xff]
        %v289 = vld [vmem:[%s287 + $0x8] sm:$0xff]
        %v290 = vld [vmem:[%s287 + $0x10] sm:$0xff]
        %v291 = vmul.f32 %v281, %v288
        %v292 = vmul.f32 %v282, %v289
        %v293 = vmul.f32 %v283, %v290
        %v294 = vmul.f32 %v284, %v288
        %v295 = vmul.f32 %v285, %v289
        %v296 = vmul.f32 %v286, %v290
        %v297 = vadd.f32 %v275, %v291
        %v298 = vadd.f32 %v276, %v292
        %v299 = vadd.f32 %v277, %v293
        %v300 = vadd.f32 %v278, %v294
        %v301 = vadd.f32 %v279, %v295
        %v302 = vadd.f32 %v280, %v296
        %v303 = vld [vmem:[#allocation2] sm:$0xff]
        %v304 = vld [vmem:[#allocation2 + $0x8] sm:$0xff]
        %v305 = vld [vmem:[#allocation2 + $0x10] sm:$0xff]
        %v306 = vld [vmem:[#allocation2 + $0x20] sm:$0xff]
        %v307 = vld [vmem:[#allocation2 + $0x28] sm:$0xff]
        %v308 = vld [vmem:[#allocation2 + $0x30] sm:$0xff]
        %s309 = scalar_lea.vmem [#allocation6], 72
        %v310 = vld [vmem:[%s309] sm:$0xff]
        %v311 = vld [vmem:[%s309 + $0x8] sm:$0xff]
        %v312 = vld [vmem:[%s309 + $0x10] sm:$0xff]
        %v313 = vmul.f32 %v303, %v310
        %v314 = vmul.f32 %v304, %v311
        %v315 = vmul.f32 %v305, %v312
        %v316 = vmul.f32 %v306, %v310
        %v317 = vmul.f32 %v307, %v311
        %v318 = vmul.f32 %v308, %v312
        %v319 = vadd.f32 %v297, %v313
        %v320 = vadd.f32 %v298, %v314
        %v321 = vadd.f32 %v299, %v315
        %v322 = vadd.f32 %v300, %v316
        %v323 = vadd.f32 %v301, %v317
        %v324 = vadd.f32 %v302, %v318
        %325 = vst [vmem:[%s218] sm:$0xff] %v319
        %326 = vst [vmem:[%s218 + $0x8] sm:$0xff] %v320
        %327 = vst [vmem:[%s218 + $0x10] sm:$0xff] %v321
        %328 = vst [vmem:[%s218 + $0x18] sm:$0xff] %v322
        %329 = vst [vmem:[%s218 + $0x20] sm:$0xff] %v323
        %330 = vst [vmem:[%s218 + $0x28] sm:$0xff] %v324
        %s331 = sand.u32 %s97, 1
        %s332 = scalar_lea.sflag [#allocation5], %s331
        %s333 = sand.u32 %s97, 1
        %s334 = smul.addr %s333, 48
        %s335 = scalar_lea.vmem [#allocation9], %s334
        // Predicated region
        $region45: #{convolution_forward.1} parent=31 // pred_check
          %p336 = pneg %p107
        $region46: #{convolution_forward.1} parent=31 // pred_check_branch
          %338 = sbr.rel (%p336) target = $region48
        $region47: #{convolution_forward.1} parent=31 // pred_region
          %s339 = smul.u32 2, %s21
          %s341 = ssub.s32 768, 768
          %342 = vsyncadd %s332, %s341
          %s343 = smul.addr %s339, 3
          %s344 = smul.addr %s343, 128
          %s345 = scalar_lea.hbm %s3, %s344
          %s346 = sshll.u32 %s335, 4
          %s347 = int_to_ptr.vmem [resolvable:$true] %s346
          %352 = dma.vmem_to_hbm [thread:$0]  %s347, 768, %s345, %s332, 128, 128, 8
        $region48: #{convolution_forward.1} parent=31 // pred_fallthru
          _
      $region32: #{convolution_forward.1} parent=5 // pred_fallthru
        _
      %p353 = scmp.le.s32.totalorder 2, %s16
      // Predicated region
      $region49: #{convolution_forward.1} parent=5 // pred_check
        %p354 = pneg %p353
      $region50: #{convolution_forward.1} parent=5 // pred_check_branch
        %356 = sbr.rel (%p354) target = $region52
      $region51: #{convolution_forward.1} parent=5 // pred_region
        %s357 = ssub.s32 %s16, 2
        // Predicated region
        $region53: #{convolution_forward.1} parent=51 // pred_check
          %p358 = pneg %p113
        $region54: #{convolution_forward.1} parent=51 // pred_check_branch
          %360 = sbr.rel (%p358) target = $region56
        $region55: #{convolution_forward.1} parent=51 // pred_region
          %s361 = sand.u32 %s98, 1
          %s362 = scalar_lea.sflag [#allocation5], %s361
          %s363 = sand.u32 %s98, 1
          %s364 = smul.addr %s363, 48
          %s365 = scalar_lea.vmem [#allocation9], %s364
          %366 = dma.done %s362, 768
        $region56: #{convolution_forward.1} parent=51 // pred_fallthru
          _
      $region52: #{convolution_forward.1} parent=5 // pred_fallthru
        _
    $region6: #{convolution_forward.1} parent=1 // loop_footer
      %s20 = sadd.s32 1, %s16
    $region7: #{convolution_forward.1} parent=1 // loop_footer_branch
      %15 = sbr.rel target = $region3
    $region8: #{convolution_forward.1} parent=1 // loop_exit
      _
    %367 = vsyncpa [#allocation4], 1
    %s368 = scalar_lea.sflag [#allocation4], 1
    %369 = vsyncpa %s368, 1
    %370 = vsyncpa [#allocation7], 1
    %371 = vsyncpa [#allocation5], 1
    %s372 = scalar_lea.sflag [#allocation5], 1
    %373 = vsyncpa %s372, 1

</llo_original>
